<compile_context>
chip_gen: v7x
topology: tpu7x:2x2x1
jax: 0.10.0
libtpu: 0.0.40
codegen_flags: <defaults>
</compile_context>

<pallas_src>
import math

import jax
import jax.numpy as jnp
from jax.experimental import pallas as pl
from jax.experimental.pallas import tpu as pltpu

NEG_SLOPE = 0.01        # nn.LeakyReLU() default negative_slope
_MIN_GRID_STEPS = 8     # target #grid steps: pipelining + v7x two-TensorCore sharding

# TODO(synk): kernel is specialized to exactly two hidden layers (3 Linear), the
# configuration exercised here; arbitrary len(hidden_sizes) would need a generated body.


def _leaky_relu(x):
    return jnp.where(x >= 0, x, NEG_SLOPE * x)


def mlp_kernel(x_ref, w1_ref, b1_ref, w2_ref, b2_ref, w3_ref, b3_ref, o_ref):
    """One batch tile of the fused MLP. Weights/biases are VMEM-resident blocks."""
    cd = w1_ref.dtype  # compute dtype (bf16 or f32); accumulation is always f32.
    x = x_ref[...].astype(cd)  # in-kernel cast: x streamed HBM->VMEM in its original dtype
    h = jnp.dot(x, w1_ref[...], preferred_element_type=jnp.float32) + b1_ref[...]
    h = _leaky_relu(h)
    h = jnp.dot(h.astype(cd), w2_ref[...], preferred_element_type=jnp.float32) + b2_ref[...]
    h = _leaky_relu(h)
    o = jnp.dot(h.astype(cd), w3_ref[...], preferred_element_type=jnp.float32) + b3_ref[...]
    o_ref[...] = o.astype(o_ref.dtype)


def _cdiv(a, b):
    return -(-a // b)


def _round_up(a, b):
    return _cdiv(a, b) * b


def _mxu_dim():
    """128 on v5e and older, 256 on v6e/v7x. Conservative fallback = 128."""
    try:
        kind = jax.devices()[0].device_kind.lower()
    except Exception:
        return 128
    return 256 if any(t in kind for t in ("v6", "v7", "7x")) else 128


def _vmem_limit_bytes():
    """Per-generation scoped VMEM limit (~48 MiB on v7x, 64 MiB on v5e/v6e)."""
    try:
        cap = int(pltpu.get_tpu_info().vmem_capacity_bytes)
    except Exception:
        return 32 << 20  # safe on every generation
    return max(16 << 20, min(64 << 20, (cap * 3) // 4))


def _choose_pack(in_f, h1, h2, out_f, itemsize, mxu_dim, max_weight_bytes=8 << 20):
    """Batch rows folded into the lane axis (block-diagonal weights) for denser I/O.

    Capped so no packed K/N dimension exceeds one MXU tile: past that, the zero
    off-diagonal blocks inflate MXU passes ~linearly in pack and flip v5e (and,
    with its 3.2 TB/s HBM, v7x) from memory-bound to MXU-bound.
    """
    if out_f % 128 == 0:
        return 1  # output already lane-dense
    full = 128 // math.gcd(128, out_f)      # pack for a fully lane-dense output store
    widest = max(in_f, h1, h2, out_f)
    cap = max(1, mxu_dim // widest)
    cap = 1 << (cap.bit_length() - 1)       # round down to a power of two
    pack = max(1, min(full, cap))
    blockdiag_bytes = pack * pack * (in_f * h1 + h1 * h2 + h2 * out_f) * itemsize
    if blockdiag_bytes > max_weight_bytes:
        return 1                            # don't blow the VMEM weight budget
    return pack


def vanilla_mlp_forward(x, params, *, compute_dtype=jnp.bfloat16, out_dtype=None,
                        tile_b_max=65536):
    """x: [B, in_features]. params: (w1,b1,w2,b2,w3,b3) with w_k [in,out], b_k [1,out].

    compute_dtype: MXU dtype for weights/activations (bf16 recommended; f32 is a
        test-only path -- multi-pass MXU and 2x HBM/VMEM bytes). Accumulation is f32.
    out_dtype: output storage dtype (None -> x.dtype). Pass bf16 to halve writeback.
    tile_b_max: max batch rows per grid step; large tiles amortize per-step overhead.
    For least HBM traffic, pass x already in bf16.
    """
    w1, b1, w2, b2, w3, b3 = params
    B, in_f = x.shape
    h1, h2, out_f = w1.shape[1], w2.shape[1], w3.shape[1]
    cd = jnp.dtype(compute_dtype)
    out_dtype = jnp.dtype(x.dtype if out_dtype is None else out_dtype)

    mxu_dim = _mxu_dim()
    vmem_limit = _vmem_limit_bytes()
    pack = _choose_pack(in_f, h1, h2, out_f, cd.itemsize, mxu_dim)

    # Cast weights to the compute dtype; fold `pack` batch rows into the lane axis via
    # block-diagonal weights so the streamed x / out rows are pack*in_f / pack*out_f
    # lanes wide (dense vector loads/stores). Biases stay f32 (added post-matmul).
    w1c, w2c, w3c = (w.astype(cd) for w in (w1, w2, w3))
    b1c, b2c, b3c = b1, b2, b3
    if pack > 1:
        eye = jnp.eye(pack, dtype=cd)
        w1c, w2c, w3c = (jnp.kron(eye, w) for w in (w1c, w2c, w3c))
        b1c, b2c, b3c = (jnp.tile(b, (1, pack)) for b in (b1, b2, b3))

    # Fold batch rows: free row-major reshape. Pad only if B isn't a multiple of pack
    # (ragged final *tiles* are handled by the cdiv grid + Pallas boundary masking,
    # so there is no full-tile padding copy of x).
    B_ceil = _round_up(B, pack)
    x_in = x if B_ceil == B else jnp.pad(x, ((0, B_ceil - B), (0, 0)))
    packed_rows = B_ceil // pack
    if pack > 1:
        x_in = x_in.reshape(packed_rows, pack * in_f)

    # Batch tile sizing (in packed rows): as large as tile_b_max / VMEM allow, capped
    # so large batches still produce >= _MIN_GRID_STEPS grid steps.
    x_row_bytes = pack * in_f * jnp.dtype(x.dtype).itemsize
    o_row_bytes = pack * out_f * out_dtype.itemsize
    budget = vmem_limit // 2                                   # headroom: weights, scratch
    cap_rows = budget // (2 * (x_row_bytes + o_row_bytes))     # double-buffered x + out
    tile_rows = min(max(1, tile_b_max // pack), max(16, cap_rows))
    tile_rows = min(tile_rows, max(16, _cdiv(packed_rows, _MIN_GRID_STEPS)))
    if packed_rows <= 16:
        tile_rows = packed_rows                                # single block == full array
    else:
        tile_rows = max(16, (tile_rows // 16) * 16)            # sublane-aligned (bf16-safe)
    grid = (_cdiv(packed_rows, tile_rows),)

    def resident(arr):  # same block every grid step -> stays VMEM-resident, no re-DMA
        return pl.BlockSpec(arr.shape, lambda i: (0, 0))
    # NOTE: the six resident specs keep the default 2 pipeline buffers; they total
    # well under 0.5 MiB here, so forcing single-buffering isn't worth extra constraints.

    out = pl.pallas_call(
        mlp_kernel,
        out_shape=jax.ShapeDtypeStruct((packed_rows, pack * out_f), out_dtype),
        grid=grid,
        in_specs=[
            pl.BlockSpec((tile_rows, pack * in_f), lambda i: (i, 0)),  # streamed x
            resident(w1c), resident(b1c),
            resident(w2c), resident(b2c),
            resident(w3c), resident(b3c),
        ],
        out_specs=pl.BlockSpec((tile_rows, pack * out_f), lambda i: (i, 0)),
        compiler_params=pltpu.CompilerParams(
            dimension_semantics=("parallel",),   # shard batch tiles across v7x's 2 TCs
            vmem_limit_bytes=vmem_limit,         # generation-aware scoped VMEM limit
        ),
    )(x_in, w1c, b1c, w2c, b2c, w3c, b3c)

    if pack > 1:
        out = out.reshape(B_ceil, out_f)         # free: row-major contiguous
    return out if B_ceil == B else out[:B]


def xavier_uniform(key, fan_in, fan_out, gain=1.0, dtype=jnp.float32):
    # Matches torch.nn.init.xavier_uniform_: U(-a, a), a = gain * sqrt(6 / (fan_in + fan_out)).
    a = gain * math.sqrt(6.0 / (fan_in + fan_out))
    # Stored already transposed ([in, out]) relative to PyTorch's [out, in].
    return jax.random.uniform(key, (fan_in, fan_out), dtype, minval=-a, maxval=a)


def init_vanilla_mlp(key, in_features, out_features, hidden_sizes):
    sizes = [in_features] + list(hidden_sizes) + [out_features]
    params = []
    for i in range(len(sizes) - 1):
        key, sub = jax.random.split(key)
        w = xavier_uniform(sub, sizes[i], sizes[i + 1])
        b = jnp.zeros((1, sizes[i + 1]), jnp.float32)  # constant_(bias, 0)
        params += [w, b]
    return tuple(params)


def reference_forward(x, params):
    w1, b1, w2, b2, w3, b3 = params
    h = _leaky_relu(x @ w1 + b1)
    h = _leaky_relu(h @ w2 + b2)
    return h @ w3 + b3


if __name__ == "__main__":
    in_features, out_features = 16, 8
    hidden_sizes = (32, 32)

    key = jax.random.PRNGKey(0)
    k_params, k_x1, k_x2 = jax.random.split(key, 3)
    params = init_vanilla_mlp(k_params, in_features, out_features, hidden_sizes)

    # 1) Small batch, f32 compute path (test-only config) — tight check vs pure-JAX ref.
    x_small = jax.random.normal(k_x1, (8, in_features), jnp.float32)
    out_small = jax.block_until_ready(
        vanilla_mlp_forward(x_small, params, compute_dtype=jnp.float32))
    ref_small = reference_forward(x_small, params)
    assert out_small.shape == (8, out_features)
    assert out_small.dtype == jnp.float32
    assert jnp.allclose(out_small, ref_small, atol=1e-4, rtol=1e-4), "f32 mismatch vs reference"

    # 2) Non-tile-multiple batch, bf16 compute + bf16 output, small tile cap ->
    #    exercises multi-step grid, resident weights across steps, the ragged (masked)
    #    final tile, and lane-dense packing.
    x_big = jax.random.normal(k_x2, (600, in_features), jnp.float32)
    out_big = jax.block_until_ready(
        vanilla_mlp_forward(x_big, params, compute_dtype=jnp.bfloat16,
                            out_dtype=jnp.bfloat16, tile_b_max=256))
    ref_big = reference_forward(x_big, params)
    assert out_big.shape == (600, out_features)
    assert out_big.dtype == jnp.bfloat16
    max_err = float(jnp.max(jnp.abs(out_big.astype(jnp.float32) - ref_big)))
    assert max_err < 1e-1, f"bf16 mismatch vs reference: max abs err {max_err}"

    print("KERNEL_OK")
</pallas_src>

<mosaic_0001>
module attributes {stable_mosaic.version = 11 : i64} {
  func.func @mlp_kernel(%arg0: i32, %arg1: memref<2x64xf32, #tpu.memory_space<vmem>>, %arg2: memref<64x128xf32, #tpu.memory_space<vmem>>, %arg3: memref<1x128xf32, #tpu.memory_space<vmem>>, %arg4: memref<128x128xf32, #tpu.memory_space<vmem>>, %arg5: memref<1x128xf32, #tpu.memory_space<vmem>>, %arg6: memref<128x32xf32, #tpu.memory_space<vmem>>, %arg7: memref<1x32xf32, #tpu.memory_space<vmem>>, %arg8: memref<2x32xf32, #tpu.memory_space<vmem>>) attributes {dimension_semantics = [#tpu.dimension_semantics<parallel>], iteration_bounds = array<i64: 1>, scalar_prefetch = 0 : i64, scratch_operands = 0 : i64, tpu.core_type = #tpu.core_type<tc>, window_params = [{transform_indices = @transform_0, window_bounds = array<i64: 2, 64>}, {pipeline_mode = #tpu.pipeline_mode<synchronous>, transform_indices = @transform_1, window_bounds = array<i64: 64, 128>}, {pipeline_mode = #tpu.pipeline_mode<synchronous>, transform_indices = @transform_2, window_bounds = array<i64: 1, 128>}, {pipeline_mode = #tpu.pipeline_mode<synchronous>, transform_indices = @transform_3, window_bounds = array<i64: 128, 128>}, {pipeline_mode = #tpu.pipeline_mode<synchronous>, transform_indices = @transform_4, window_bounds = array<i64: 1, 128>}, {pipeline_mode = #tpu.pipeline_mode<synchronous>, transform_indices = @transform_5, window_bounds = array<i64: 128, 32>}, {pipeline_mode = #tpu.pipeline_mode<synchronous>, transform_indices = @transform_6, window_bounds = array<i64: 1, 32>}, {transform_indices = @transform_7, window_bounds = array<i64: 2, 32>}]} {
    %c0 = arith.constant 0 : index
    %c0_0 = arith.constant 0 : index
    %0 = vector.load %arg1[%c0, %c0_0] : memref<2x64xf32, #tpu.memory_space<vmem>>, vector<2x64xf32>
    %c0_1 = arith.constant 0 : index
    %c0_2 = arith.constant 0 : index
    %1 = vector.load %arg2[%c0_1, %c0_2] : memref<64x128xf32, #tpu.memory_space<vmem>>, vector<64x128xf32>
    %cst = arith.constant dense<0.000000e+00> : vector<2x128xf32>
    %2 = tpu.matmul %0, %1, %cst {dimension_numbers = #tpu.dot_dimension_numbers<[1], [0], [0], [1], [0, 0, 1, 1], [], []>} : vector<2x64xf32>, vector<64x128xf32>, vector<2x128xf32> -> vector<2x128xf32>
    %c0_3 = arith.constant 0 : index
    %c0_4 = arith.constant 0 : index
    %3 = vector.load %arg3[%c0_3, %c0_4] : memref<1x128xf32, #tpu.memory_space<vmem>>, vector<1x128xf32>
    %4 = vector.broadcast %3 : vector<1x128xf32> to vector<2x128xf32>
    %5 = arith.addf %2, %4 : vector<2x128xf32>
    %cst_5 = arith.constant 0.000000e+00 : f32
    %6 = vector.broadcast %cst_5 : f32 to vector<2x128xf32>
    %7 = arith.cmpf oge, %5, %6 : vector<2x128xf32>
    %cst_6 = arith.constant 0.00999999977 : f32
    %8 = vector.broadcast %cst_6 : f32 to vector<2x128xf32>
    %9 = arith.mulf %8, %5 : vector<2x128xf32>
    %10 = arith.select %7, %5, %9 : vector<2x128xi1>, vector<2x128xf32>
    %c0_7 = arith.constant 0 : index
    %c0_8 = arith.constant 0 : index
    %11 = vector.load %arg4[%c0_7, %c0_8] : memref<128x128xf32, #tpu.memory_space<vmem>>, vector<128x128xf32>
    %cst_9 = arith.constant dense<0.000000e+00> : vector<2x128xf32>
    %12 = tpu.matmul %10, %11, %cst_9 {dimension_numbers = #tpu.dot_dimension_numbers<[1], [0], [0], [1], [0, 0, 1, 1], [], []>} : vector<2x128xf32>, vector<128x128xf32>, vector<2x128xf32> -> vector<2x128xf32>
    %c0_10 = arith.constant 0 : index
    %c0_11 = arith.constant 0 : index
    %13 = vector.load %arg5[%c0_10, %c0_11] : memref<1x128xf32, #tpu.memory_space<vmem>>, vector<1x128xf32>
    %14 = vector.broadcast %13 : vector<1x128xf32> to vector<2x128xf32>
    %15 = arith.addf %12, %14 : vector<2x128xf32>
    %cst_12 = arith.constant 0.000000e+00 : f32
    %16 = vector.broadcast %cst_12 : f32 to vector<2x128xf32>
    %17 = arith.cmpf oge, %15, %16 : vector<2x128xf32>
    %cst_13 = arith.constant 0.00999999977 : f32
    %18 = vector.broadcast %cst_13 : f32 to vector<2x128xf32>
    %19 = arith.mulf %18, %15 : vector<2x128xf32>
    %20 = arith.select %17, %15, %19 : vector<2x128xi1>, vector<2x128xf32>
    %c0_14 = arith.constant 0 : index
    %c0_15 = arith.constant 0 : index
    %21 = vector.load %arg6[%c0_14, %c0_15] : memref<128x32xf32, #tpu.memory_space<vmem>>, vector<128x32xf32>
    %cst_16 = arith.constant dense<0.000000e+00> : vector<2x32xf32>
    %22 = tpu.matmul %20, %21, %cst_16 {dimension_numbers = #tpu.dot_dimension_numbers<[1], [0], [0], [1], [0, 0, 1, 1], [], []>} : vector<2x128xf32>, vector<128x32xf32>, vector<2x32xf32> -> vector<2x32xf32>
    %c0_17 = arith.constant 0 : index
    %c0_18 = arith.constant 0 : index
    %23 = vector.load %arg7[%c0_17, %c0_18] : memref<1x32xf32, #tpu.memory_space<vmem>>, vector<1x32xf32>
    %24 = vector.broadcast %23 : vector<1x32xf32> to vector<2x32xf32>
    %25 = arith.addf %22, %24 : vector<2x32xf32>
    %c0_19 = arith.constant 0 : index
    %c0_20 = arith.constant 0 : index
    %26 = vector.load %arg8[%c0_19, %c0_20] : memref<2x32xf32, #tpu.memory_space<vmem>>, vector<2x32xf32>
    tpu.vector_store %arg8[%c0_19, %c0_20], %25 {strides = array<i32>} : memref<2x32xf32, #tpu.memory_space<vmem>>, vector<2x32xf32>,
    return
  }
  func.func @transform_0(%arg0: i32) -> (i32, i32) {
    %c0_i32 = arith.constant 0 : i32
    %c0_i32_0 = arith.constant 0 : i32
    return %arg0, %c0_i32 : i32, i32
  }
  func.func @transform_1(%arg0: i32) -> (i32, i32) {
    %c0_i32 = arith.constant 0 : i32
    %c0_i32_0 = arith.constant 0 : i32
    %c0_i32_1 = arith.constant 0 : i32
    return %c0_i32, %c0_i32_0 : i32, i32
  }
  func.func @transform_2(%arg0: i32) -> (i32, i32) {
    %c0_i32 = arith.constant 0 : i32
    %c0_i32_0 = arith.constant 0 : i32
    %c0_i32_1 = arith.constant 0 : i32
    return %c0_i32, %c0_i32_0 : i32, i32
  }
  func.func @transform_3(%arg0: i32) -> (i32, i32) {
    %c0_i32 = arith.constant 0 : i32
    %c0_i32_0 = arith.constant 0 : i32
    %c0_i32_1 = arith.constant 0 : i32
    return %c0_i32, %c0_i32_0 : i32, i32
  }
  func.func @transform_4(%arg0: i32) -> (i32, i32) {
    %c0_i32 = arith.constant 0 : i32
    %c0_i32_0 = arith.constant 0 : i32
    %c0_i32_1 = arith.constant 0 : i32
    return %c0_i32, %c0_i32_0 : i32, i32
  }
  func.func @transform_5(%arg0: i32) -> (i32, i32) {
    %c0_i32 = arith.constant 0 : i32
    %c0_i32_0 = arith.constant 0 : i32
    %c0_i32_1 = arith.constant 0 : i32
    return %c0_i32, %c0_i32_0 : i32, i32
  }
  func.func @transform_6(%arg0: i32) -> (i32, i32) {
    %c0_i32 = arith.constant 0 : i32
    %c0_i32_0 = arith.constant 0 : i32
    %c0_i32_1 = arith.constant 0 : i32
    return %c0_i32, %c0_i32_0 : i32, i32
  }
  func.func @transform_7(%arg0: i32) -> (i32, i32) {
    %c0_i32 = arith.constant 0 : i32
    %c0_i32_0 = arith.constant 0 : i32
    return %arg0, %c0_i32 : i32, i32
  }
}

</mosaic_0001>

<llo_original>
// kernel: tpu_custom_call.1
$region0: #{tpu_custom_call.1}
  #allocation0 [shape = 'u32[]', space=smem, size = 0x4, offset = 0x4, fixed_abs, tag = 'smem constant byte address 0x4 - core index']
  #allocation1 [shape = 'u32[144,128]{1,0:T(1,128)}', space=vmem, size = 0x12000, scoped, tag = 'internal scratch']
  %s0 = inlined_call_operand.vmem [shape: f32[2,64], index: 0, kind: input, shape index: {}]
  %s1 = inlined_call_operand.hbm [shape: f32[64,128], index: 1, kind: input, shape index: {}]
  %s2 = inlined_call_operand.vmem [shape: f32[1,128], index: 2, kind: input, shape index: {}]
  %s3 = inlined_call_operand.vmem [shape: f32[128,128], index: 3, kind: input, shape index: {}]
  %s4 = inlined_call_operand.vmem [shape: f32[1,128], index: 4, kind: input, shape index: {}]
  %s5 = inlined_call_operand.vmem [shape: f32[128,32], index: 5, kind: input, shape index: {}]
  %s6 = inlined_call_operand.vmem [shape: f32[1,32], index: 6, kind: input, shape index: {}]
  %s7 = inlined_call_operand.hbm [shape: f32[2,32], index: 7, kind: output, shape index: {}]
  %s8 = sld [smem:[#allocation0]]
  $region42: #{tpu_custom_call.1} parent=0
    _
  %s10 = ssub.s32 1, %s8
  %s11 = scalar_select 0, %s10, %s8
  $region1: #{tpu_custom_call.1} parent=0
    #allocation2 [shape = 'u8[32768]{0}', space=vmem, size = 0x8000, scoped, tag = 'input window, operand 1, single buffered']
    #allocation3 [shape = 's32[1]{0}', space=sflag, size = 0x4, scoped, tag = 'scoped memory for tpu_custom_call.1']
    #allocation4 [shape = 's32[1]{0}', space=sflag, size = 0x4, scoped, tag = 'scoped memory for tpu_custom_call.1']
    #allocation5 [shape = 'u8[1024]{0}', space=vmem, size = 0x400, scoped, tag = 'output window, operand 0, single buffered']
    %12 = vsyncpa [#allocation3], 0
    %13 = vsyncpa [#allocation4], 0
    // Predicated region
    $region2: #{tpu_custom_call.1} parent=1 // pred_check
      _
    $region3: #{tpu_custom_call.1} parent=1 // pred_check_branch
      %15 = sbr.rel (0) target = $region5
    $region4: #{tpu_custom_call.1} parent=1 // pred_region
      _
    $region5: #{tpu_custom_call.1} parent=1 // pred_fallthru
      _
    // Predicated region
    $region6: #{tpu_custom_call.1} parent=1 // pred_check
      _
    $region7: #{tpu_custom_call.1} parent=1 // pred_check_branch
      %17 = sbr.rel (0) target = $region9
    $region8: #{tpu_custom_call.1} parent=1 // pred_region
      %s19 = ssub.s32 1024, 1024
      %20 = vsyncadd [#allocation3], %s19
      %s21 = sshll.u32 [#allocation2], 4
      %s22 = int_to_ptr.vmem [resolvable:$true] %s21
      %27 = dma.hbm_to_vmem [thread:$0]  %s1, 1024, %s22, [#allocation3], 128, 128, 8
    $region9: #{tpu_custom_call.1} parent=1 // pred_fallthru
      _
    // Predicated region
    $region10: #{tpu_custom_call.1} parent=1 // pred_check
      _
    $region11: #{tpu_custom_call.1} parent=1 // pred_check_branch
      %29 = sbr.rel (0) target = $region13
    $region12: #{tpu_custom_call.1} parent=1 // pred_region
      _
    $region13: #{tpu_custom_call.1} parent=1 // pred_fallthru
      _
    // Predicated region
    $region14: #{tpu_custom_call.1} parent=1 // pred_check
      _
    $region15: #{tpu_custom_call.1} parent=1 // pred_check_branch
      %31 = sbr.rel (0) target = $region17
    $region16: #{tpu_custom_call.1} parent=1 // pred_region
      _
    $region17: #{tpu_custom_call.1} parent=1 // pred_fallthru
      _
    // Predicated region
    $region18: #{tpu_custom_call.1} parent=1 // pred_check
      _
    $region19: #{tpu_custom_call.1} parent=1 // pred_check_branch
      %33 = sbr.rel (0) target = $region21
    $region20: #{tpu_custom_call.1} parent=1 // pred_region
      _
    $region21: #{tpu_custom_call.1} parent=1 // pred_fallthru
      _
    // Predicated region
    $region22: #{tpu_custom_call.1} parent=1 // pred_check
      _
    $region23: #{tpu_custom_call.1} parent=1 // pred_check_branch
      %35 = sbr.rel (0) target = $region25
    $region24: #{tpu_custom_call.1} parent=1 // pred_region
      _
    $region25: #{tpu_custom_call.1} parent=1 // pred_fallthru
      _
    // Predicated region
    $region26: #{tpu_custom_call.1} parent=1 // pred_check
      _
    $region27: #{tpu_custom_call.1} parent=1 // pred_check_branch
      %37 = sbr.rel (0) target = $region29
    $region28: #{tpu_custom_call.1} parent=1 // pred_region
      _
    $region29: #{tpu_custom_call.1} parent=1 // pred_fallthru
      _
    // Predicated region
    $region30: #{tpu_custom_call.1} parent=1 // pred_check
      _
    $region31: #{tpu_custom_call.1} parent=1 // pred_check_branch
      %39 = sbr.rel (0) target = $region33
    $region32: #{tpu_custom_call.1} parent=1 // pred_region
      %40 = dma.done [#allocation3], 1024
    $region33: #{tpu_custom_call.1} parent=1 // pred_fallthru
      _
    %v41 = vld [vmem:[%s0] sm:$0x3]
    %v42 = vld [vmem:[#allocation2] sm:$0xff]
    %v43 = vld [vmem:[#allocation2 + $0x8] sm:$0xff]
    %v44 = vld [vmem:[#allocation2 + $0x10] sm:$0xff]
    %v45 = vld [vmem:[#allocation2 + $0x18] sm:$0xff]
    %v46 = vld [vmem:[#allocation2 + $0x20] sm:$0xff]
    %v47 = vld [vmem:[#allocation2 + $0x28] sm:$0xff]
    %v48 = vld [vmem:[#allocation2 + $0x30] sm:$0xff]
    %v49 = vld [vmem:[#allocation2 + $0x38] sm:$0xff]
    %v50 = vld [vmem:[%s2] sm:$0x1]
    %v52 = vlaneseq
    %v53 = vshrl.u32 %v52, 7
    %v54 = vsub.s32 0, %v53
    %v55 = vrot.slane %v50, %v54
    %vm57 = vcmask 523264
    %v59 = vsel %vm57, %v41, 0
    %61 = vmatprep.subr.mxu0 0.0
    %62 = vmatpush1.msra.mxu0 %v42
    %63 = vmatprep.subr.mxu0 0.0
    %64 = vmatpush1.msra.mxu0 %v43
    %65 = vmatprep.subr.mxu0 0.0
    %66 = vmatpush1.msra.mxu0 %v44
    %67 = vmatprep.subr.mxu0 0.0
    %68 = vmatpush1.msra.mxu0 %v45
    %69 = vmatprep.subr.mxu0 0.0
    %70 = vmatpush1.msra.mxu0 %v46
    %71 = vmatprep.subr.mxu0 0.0
    %72 = vmatpush1.msra.mxu0 %v47
    %73 = vmatprep.subr.mxu0 0.0
    %74 = vmatpush1.msra.mxu0 %v48
    %75 = vmatprep.subr.mxu0 0.0
    %76 = vmatpush1.msra.mxu0 %v49
    %77 = vmatprep.subr.mxu0 0.0
    %78 = vmatpush1.msra.mxu0 0.0
    %79 = vmatprep.subr.mxu0 0.0
    %80 = vmatpush1.msra.mxu0 0.0
    %81 = vmatprep.subr.mxu0 0.0
    %82 = vmatpush1.msra.mxu0 0.0
    %83 = vmatprep.subr.mxu0 0.0
    %84 = vmatpush1.msra.mxu0 0.0
    %85 = vmatprep.subr.mxu0 0.0
    %86 = vmatpush1.msra.mxu0 0.0
    %87 = vmatprep.subr.mxu0 0.0
    %88 = vmatpush1.msra.mxu0 0.0
    %89 = vmatprep.subr.mxu0 0.0
    %90 = vmatpush1.msra.mxu0 0.0
    %91 = vmatprep.subr.mxu0 0.0
    %92 = vmatpush1.msra.mxu0 0.0
    %93 = vmatprep.subr.mxu0 0.0
    %94 = vmatpush1.msra.mxu0 0.0
    %95 = vmatprep.subr.mxu0 0.0
    %96 = vmatpush1.msra.mxu0 0.0
    %97 = vmatprep.subr.mxu0 0.0
    %98 = vmatpush1.msra.mxu0 0.0
    %99 = vmatprep.subr.mxu0 0.0
    %100 = vmatpush1.msra.mxu0 0.0
    %101 = vmatprep.subr.mxu0 0.0
    %102 = vmatpush1.msra.mxu0 0.0
    %103 = vmatprep.subr.mxu0 0.0
    %104 = vmatpush1.msra.mxu0 0.0
    %105 = vmatprep.subr.mxu0 0.0
    %106 = vmatpush1.msra.mxu0 0.0
    %107 = vmatprep.subr.mxu0 0.0
    %108 = vmatpush1.msra.mxu0 0.0
    %109 = vmatprep.subr.mxu0 0.0
    %110 = vmatpush1.msra.mxu0 0.0
    %111 = vmatprep.subr.mxu0 0.0
    %112 = vmatpush1.msra.mxu0 0.0
    %113 = vmatprep.subr.mxu0 0.0
    %114 = vmatpush1.msra.mxu0 0.0
    %115 = vmatprep.subr.mxu0 0.0
    %116 = vmatpush1.msra.mxu0 0.0
    %117 = vmatprep.subr.mxu0 0.0
    %118 = vmatpush1.msra.mxu0 0.0
    %119 = vmatprep.subr.mxu0 0.0
    %120 = vmatpush1.msra.mxu0 0.0
    %121 = vmatprep.subr.mxu0 0.0
    %122 = vmatpush1.msra.mxu0 0.0
    %123 = vmatprep.subr.mxu0 0.0
    %124 = vmatpush1.msra.mxu0 0.0
    %125 = vmatprep.mubr.f32.mxu0 0.0
    %126 = vmatmul.mubr.f32.gmra.mrb[0].mxu0 %v59
    %v127 = vpop.f32.mrb[0].mxu0
    %v128 = vadd.f32 %v55, %v127
    %v129 = vpop.f32.mrb[0].mxu0
    %130 = vdwg.mxu0
    %vm131 = vcmp.ge.f32.partialorder %v128, 0.0
    %v132 = vmul.f32 %v128, 0.01
    %v133 = vsel %vm131, %v128, %v132
    %v134 = vld [vmem:[%s3] sm:$0xff]
    %v135 = vld [vmem:[%s3 + $0x8] sm:$0xff]
    %v136 = vld [vmem:[%s3 + $0x10] sm:$0xff]
    %v137 = vld [vmem:[%s3 + $0x18] sm:$0xff]
    %v138 = vld [vmem:[%s3 + $0x20] sm:$0xff]
    %v139 = vld [vmem:[%s3 + $0x28] sm:$0xff]
    %v140 = vld [vmem:[%s3 + $0x30] sm:$0xff]
    %v141 = vld [vmem:[%s3 + $0x38] sm:$0xff]
    %v142 = vld [vmem:[%s3 + $0x40] sm:$0xff]
    %v143 = vld [vmem:[%s3 + $0x48] sm:$0xff]
    %v144 = vld [vmem:[%s3 + $0x50] sm:$0xff]
    %v145 = vld [vmem:[%s3 + $0x58] sm:$0xff]
    %v146 = vld [vmem:[%s3 + $0x60] sm:$0xff]
    %v147 = vld [vmem:[%s3 + $0x68] sm:$0xff]
    %v148 = vld [vmem:[%s3 + $0x70] sm:$0xff]
    %v149 = vld [vmem:[%s3 + $0x78] sm:$0xff]
    %v150 = vld [vmem:[%s4] sm:$0x1]
    %v152 = vlaneseq
    %v153 = vshrl.u32 %v152, 7
    %v154 = vsub.s32 0, %v153
    %v155 = vrot.slane %v150, %v154
    %157 = vmatprep.subr.mxu0 0.0
    %158 = vmatpush1.msra.mxu0 %v134
    %159 = vmatprep.subr.mxu0 0.0
    %160 = vmatpush1.msra.mxu0 %v135
    %161 = vmatprep.subr.mxu0 0.0
    %162 = vmatpush1.msra.mxu0 %v136
    %163 = vmatprep.subr.mxu0 0.0
    %164 = vmatpush1.msra.mxu0 %v137
    %165 = vmatprep.subr.mxu0 0.0
    %166 = vmatpush1.msra.mxu0 %v138
    %167 = vmatprep.subr.mxu0 0.0
    %168 = vmatpush1.msra.mxu0 %v139
    %169 = vmatprep.subr.mxu0 0.0
    %170 = vmatpush1.msra.mxu0 %v140
    %171 = vmatprep.subr.mxu0 0.0
    %172 = vmatpush1.msra.mxu0 %v141
    %173 = vmatprep.subr.mxu0 0.0
    %174 = vmatpush1.msra.mxu0 %v142
    %175 = vmatprep.subr.mxu0 0.0
    %176 = vmatpush1.msra.mxu0 %v143
    %177 = vmatprep.subr.mxu0 0.0
    %178 = vmatpush1.msra.mxu0 %v144
    %179 = vmatprep.subr.mxu0 0.0
    %180 = vmatpush1.msra.mxu0 %v145
    %181 = vmatprep.subr.mxu0 0.0
    %182 = vmatpush1.msra.mxu0 %v146
    %183 = vmatprep.subr.mxu0 0.0
    %184 = vmatpush1.msra.mxu0 %v147
    %185 = vmatprep.subr.mxu0 0.0
    %186 = vmatpush1.msra.mxu0 %v148
    %187 = vmatprep.subr.mxu0 0.0
    %188 = vmatpush1.msra.mxu0 %v149
    %189 = vmatprep.subr.mxu0 0.0
    %190 = vmatpush1.msra.mxu0 0.0
    %191 = vmatprep.subr.mxu0 0.0
    %192 = vmatpush1.msra.mxu0 0.0
    %193 = vmatprep.subr.mxu0 0.0
    %194 = vmatpush1.msra.mxu0 0.0
    %195 = vmatprep.subr.mxu0 0.0
    %196 = vmatpush1.msra.mxu0 0.0
    %197 = vmatprep.subr.mxu0 0.0
    %198 = vmatpush1.msra.mxu0 0.0
    %199 = vmatprep.subr.mxu0 0.0
    %200 = vmatpush1.msra.mxu0 0.0
    %201 = vmatprep.subr.mxu0 0.0
    %202 = vmatpush1.msra.mxu0 0.0
    %203 = vmatprep.subr.mxu0 0.0
    %204 = vmatpush1.msra.mxu0 0.0
    %205 = vmatprep.subr.mxu0 0.0
    %206 = vmatpush1.msra.mxu0 0.0
    %207 = vmatprep.subr.mxu0 0.0
    %208 = vmatpush1.msra.mxu0 0.0
    %209 = vmatprep.subr.mxu0 0.0
    %210 = vmatpush1.msra.mxu0 0.0
    %211 = vmatprep.subr.mxu0 0.0
    %212 = vmatpush1.msra.mxu0 0.0
    %213 = vmatprep.subr.mxu0 0.0
    %214 = vmatpush1.msra.mxu0 0.0
    %215 = vmatprep.subr.mxu0 0.0
    %216 = vmatpush1.msra.mxu0 0.0
    %217 = vmatprep.subr.mxu0 0.0
    %218 = vmatpush1.msra.mxu0 0.0
    %219 = vmatprep.subr.mxu0 0.0
    %220 = vmatpush1.msra.mxu0 0.0
    %221 = vmatprep.mubr.f32.mxu0 0.0
    %222 = vmatmul.mubr.f32.gmra.mrb[0].mxu0 %v133
    %v223 = vpop.f32.mrb[0].mxu0
    %v224 = vadd.f32 %v155, %v223
    %v225 = vpop.f32.mrb[0].mxu0
    %226 = vdwg.mxu0
    %vm227 = vcmp.ge.f32.partialorder %v224, 0.0
    %v228 = vmul.f32 %v224, 0.01
    %v229 = vsel %vm227, %v224, %v228
    %v230 = vld [vmem:[%s5] sm:$0xff]
    %v231 = vld [vmem:[%s5 + $0x8] sm:$0xff]
    %v232 = vld [vmem:[%s5 + $0x10] sm:$0xff]
    %v233 = vld [vmem:[%s5 + $0x18] sm:$0xff]
    %v234 = vld [vmem:[%s5 + $0x20] sm:$0xff]
    %v235 = vld [vmem:[%s5 + $0x28] sm:$0xff]
    %v236 = vld [vmem:[%s5 + $0x30] sm:$0xff]
    %v237 = vld [vmem:[%s5 + $0x38] sm:$0xff]
    %v238 = vld [vmem:[%s5 + $0x40] sm:$0xff]
    %v239 = vld [vmem:[%s5 + $0x48] sm:$0xff]
    %v240 = vld [vmem:[%s5 + $0x50] sm:$0xff]
    %v241 = vld [vmem:[%s5 + $0x58] sm:$0xff]
    %v242 = vld [vmem:[%s5 + $0x60] sm:$0xff]
    %v243 = vld [vmem:[%s5 + $0x68] sm:$0xff]
    %v244 = vld [vmem:[%s5 + $0x70] sm:$0xff]
    %v245 = vld [vmem:[%s5 + $0x78] sm:$0xff]
    %v246 = vld [vmem:[%s6] sm:$0x1]
    %v248 = vlaneseq
    %v249 = vshrl.u32 %v248, 7
    %v250 = vsub.s32 0, %v249
    %v251 = vrot.slane %v246, %v250
    %253 = vmatprep.subr.mxu0 0.0
    %254 = vmatpush1.msra.mxu0 %v230
    %255 = vmatprep.subr.mxu0 0.0
    %256 = vmatpush1.msra.mxu0 %v231
    %257 = vmatprep.subr.mxu0 0.0
    %258 = vmatpush1.msra.mxu0 %v232
    %259 = vmatprep.subr.mxu0 0.0
    %260 = vmatpush1.msra.mxu0 %v233
    %261 = vmatprep.subr.mxu0 0.0
    %262 = vmatpush1.msra.mxu0 %v234
    %263 = vmatprep.subr.mxu0 0.0
    %264 = vmatpush1.msra.mxu0 %v235
    %265 = vmatprep.subr.mxu0 0.0
    %266 = vmatpush1.msra.mxu0 %v236
    %267 = vmatprep.subr.mxu0 0.0
    %268 = vmatpush1.msra.mxu0 %v237
    %269 = vmatprep.subr.mxu0 0.0
    %270 = vmatpush1.msra.mxu0 %v238
    %271 = vmatprep.subr.mxu0 0.0
    %272 = vmatpush1.msra.mxu0 %v239
    %273 = vmatprep.subr.mxu0 0.0
    %274 = vmatpush1.msra.mxu0 %v240
    %275 = vmatprep.subr.mxu0 0.0
    %276 = vmatpush1.msra.mxu0 %v241
    %277 = vmatprep.subr.mxu0 0.0
    %278 = vmatpush1.msra.mxu0 %v242
    %279 = vmatprep.subr.mxu0 0.0
    %280 = vmatpush1.msra.mxu0 %v243
    %281 = vmatprep.subr.mxu0 0.0
    %282 = vmatpush1.msra.mxu0 %v244
    %283 = vmatprep.subr.mxu0 0.0
    %284 = vmatpush1.msra.mxu0 %v245
    %285 = vmatprep.subr.mxu0 0.0
    %286 = vmatpush1.msra.mxu0 0.0
    %287 = vmatprep.subr.mxu0 0.0
    %288 = vmatpush1.msra.mxu0 0.0
    %289 = vmatprep.subr.mxu0 0.0
    %290 = vmatpush1.msra.mxu0 0.0
    %291 = vmatprep.subr.mxu0 0.0
    %292 = vmatpush1.msra.mxu0 0.0
    %293 = vmatprep.subr.mxu0 0.0
    %294 = vmatpush1.msra.mxu0 0.0
    %295 = vmatprep.subr.mxu0 0.0
    %296 = vmatpush1.msra.mxu0 0.0
    %297 = vmatprep.subr.mxu0 0.0
    %298 = vmatpush1.msra.mxu0 0.0
    %299 = vmatprep.subr.mxu0 0.0
    %300 = vmatpush1.msra.mxu0 0.0
    %301 = vmatprep.subr.mxu0 0.0
    %302 = vmatpush1.msra.mxu0 0.0
    %303 = vmatprep.subr.mxu0 0.0
    %304 = vmatpush1.msra.mxu0 0.0
    %305 = vmatprep.subr.mxu0 0.0
    %306 = vmatpush1.msra.mxu0 0.0
    %307 = vmatprep.subr.mxu0 0.0
    %308 = vmatpush1.msra.mxu0 0.0
    %309 = vmatprep.subr.mxu0 0.0
    %310 = vmatpush1.msra.mxu0 0.0
    %311 = vmatprep.subr.mxu0 0.0
    %312 = vmatpush1.msra.mxu0 0.0
    %313 = vmatprep.subr.mxu0 0.0
    %314 = vmatpush1.msra.mxu0 0.0
    %315 = vmatprep.subr.mxu0 0.0
    %316 = vmatpush1.msra.mxu0 0.0
    %317 = vmatprep.mubr.f32.mxu0 0.0
    %318 = vmatmul.mubr.f32.gmra.mrb[0].mxu0 %v229
    %v319 = vpop.f32.mrb[0].mxu0
    %v320 = vadd.f32 %v251, %v319
    %v321 = vpop.f32.mrb[0].mxu0
    %322 = vdwg.mxu0
    %vm323 = vcmask 254976
    %324 = vst.msk [vmem:[#allocation5] sm:$0x3] %vm323, %v320
    // Predicated region
    $region34: #{tpu_custom_call.1} parent=1 // pred_check
      _
    $region35: #{tpu_custom_call.1} parent=1 // pred_check_branch
      %326 = sbr.rel (0) target = $region37
    $region36: #{tpu_custom_call.1} parent=1 // pred_region
      %s328 = ssub.s32 32, 32
      %329 = vsyncadd [#allocation4], %s328
      %s331 = sshll.u32 [#allocation5], 4
      %s332 = int_to_ptr.vmem [resolvable:$true] %s331
      %334 = dma.vmem_to_hbm [thread:$0]  %s332, 32, %s7, [#allocation4]
    $region37: #{tpu_custom_call.1} parent=1 // pred_fallthru
      _
    // Predicated region
    $region38: #{tpu_custom_call.1} parent=1 // pred_check
      _
    $region39: #{tpu_custom_call.1} parent=1 // pred_check_branch
      %336 = sbr.rel (0) target = $region41
    $region40: #{tpu_custom_call.1} parent=1 // pred_region
      %337 = dma.done [#allocation4], 32
    $region41: #{tpu_custom_call.1} parent=1 // pred_fallthru
      _
    %338 = vsyncpa [#allocation3], 1
    %339 = vsyncpa [#allocation4], 1

</llo_original>
